<compile_context>
chip_gen: v7x
topology: tpu7x:2x2x1
jax: 0.10.0
libtpu: 0.0.40
codegen_flags: <defaults>
</compile_context>

<pallas_src>
import functools

import numpy as np

import jax
import jax.numpy as jnp
from jax.experimental import pallas as pl
from jax.experimental.pallas import tpu as pltpu


def _residual_block_kernel(x_ref, m_ref, w1_ref, b1_ref, w2_ref, b2_ref,
                           o_ref, *, N, H, W, C):
    # x_ref : (N, C, H*W)     whole batch, channels-first, spatial on lanes
    # m_ref : (8, C, N*H*W)   precomputed border masks for the off-center taps
    # w*_ref: (C, 9*C)        conv weights, 9 taps flattened along K
    # b*_ref: (C, 1)
    # o_ref : (N, C, H*W)
    HW = H * W
    total = N * HW

    # Fold the batch onto the lane axis: (N, C, HW) -> (C, N*HW).  Concatenating
    # at 256-lane (multiple-of-128) boundaries is pure vreg placement.
    x = jnp.concatenate([x_ref[n] for n in range(N)],
                        axis=1).astype(jnp.float32)            # (C, N*HW)

    offsets = [(kh - 1, kw - 1) for kh in range(3) for kw in range(3)]

    def conv3x3(inp, w_ref, b_ref):
        # im2col along K: 9 shifted/masked taps stacked along sublanes into
        # (9*C, N*HW); one fused MXU matmul per conv.  With C=8 every tap lands
        # on a sublane-group boundary, so the concat is relayout-free.  The
        # precomputed masks implement 'same' zero padding AND zero any lane
        # whose roll crossed a batch-element seam.
        taps = []
        t = 0
        for dh, dw in offsets:
            if (dh, dw) == (0, 0):
                taps.append(inp)
            else:
                s = dh * W + dw                       # flattened spatial shift
                shifted = pltpu.roll(inp, shift=(-s) % total, axis=1)
                taps.append(shifted * m_ref[t])
                t += 1
        xs = jnp.concatenate(taps, axis=0)            # (9*C, N*HW)
        lhs = w_ref[...]
        rhs = xs.astype(lhs.dtype)                    # optional bf16 cast only
        return jnp.dot(lhs, rhs,
                       preferred_element_type=jnp.float32) + b_ref[...]

    y = jnp.maximum(conv3x3(x, w1_ref, b1_ref), 0.0)  # conv1 + bias + ReLU
    y2 = conv3x3(y, w2_ref, b2_ref)                   # conv2 + bias
    out = jnp.maximum(x + y2, 0.0)                    # residual + ReLU

    for n in range(N):                                # 256-lane dense stores
        o_ref[n] = out[:, n * HW:(n + 1) * HW].astype(o_ref.dtype)


def residual_block_pallas(x_nchw, w1, b1, w2, b2, *, matmul_dtype=jnp.float32):
    """x_nchw: (N, C, H, W) f32; w*: (Cout, Cin, 3, 3); b*: (C,).

    matmul_dtype=jnp.bfloat16 halves MXU operand traffic on v6e/v7x (per the
    perf review) at the cost of ~1e-2-level numerics; default f32 keeps the
    strict tolerance and is free here since the kernel is latency-bound.
    """
    N, C, H, W = x_nchw.shape
    HW = H * W
    total = N * HW

    # NCHW consumed directly: (N, C, H, W) -> (N, C, H*W) is a free reshape.
    x_flat = x_nchw.reshape(N, C, HW)

    def flat_w(w):
        # (Cout, Cin, 3, 3) -> (Cout, 3, 3, Cin) -> (Cout, 9*Cin): column order
        # (kh*3 + kw)*C + cin matches the tap stacking order in the kernel.
        return jnp.transpose(w, (0, 2, 3, 1)).reshape(C, 9 * C).astype(matmul_dtype)

    w1f, w2f = flat_w(w1), flat_w(w2)
    b1c = b1.reshape(C, 1).astype(jnp.float32)
    b2c = b2.reshape(C, 1).astype(jnp.float32)

    # Compile-time border masks for the 8 off-center taps, from per-element
    # local coordinates (pos % HW), pre-broadcast over C so the kernel does a
    # single vmul per tap with no in-kernel broadcast/iota work.
    pos = np.arange(total)
    local = pos % HW
    hh = local // W
    ww = local % W
    mask_rows = []
    for kh in range(3):
        for kw in range(3):
            dh, dw = kh - 1, kw - 1
            if (dh, dw) == (0, 0):
                continue
            valid = ((hh + dh >= 0) & (hh + dh < H) &
                     (ww + dw >= 0) & (ww + dw < W))
            mask_rows.append(valid.astype(np.float32))
    masks_np = np.ascontiguousarray(
        np.broadcast_to(np.stack(mask_rows, axis=0)[:, None, :],
                        (8, C, total)))
    masks = jnp.asarray(masks_np)                     # (8, C, N*HW) constant

    kernel = functools.partial(_residual_block_kernel, N=N, H=H, W=W, C=C)

    out_flat = pl.pallas_call(
        kernel,
        out_shape=jax.ShapeDtypeStruct((N, C, HW), x_nchw.dtype),
        grid_spec=pltpu.PrefetchScalarGridSpec(
            num_scalar_prefetch=0,
            grid=(1,),                                # whole batch in one step
            in_specs=[
                pl.BlockSpec((N, C, HW), lambda i: (0, 0, 0)),
                pl.BlockSpec((8, C, total), lambda i: (0, 0, 0)),
                pl.BlockSpec((C, 9 * C), lambda i: (0, 0)),
                pl.BlockSpec((C, 1), lambda i: (0, 0)),
                pl.BlockSpec((C, 9 * C), lambda i: (0, 0)),
                pl.BlockSpec((C, 1), lambda i: (0, 0)),
            ],
            out_specs=pl.BlockSpec((N, C, HW), lambda i: (0, 0, 0)),
        ),
        compiler_params=pltpu.CompilerParams(
            dimension_semantics=("arbitrary",)),
    )(x_flat, masks, w1f, b1c, w2f, b2c)

    return out_flat.reshape(N, C, H, W)


def residual_block_ref(x_nchw, w1, b1, w2, b2):
    """Pure-JAX reference matching the PyTorch forward (NCHW)."""
    dn = jax.lax.conv_dimension_numbers(x_nchw.shape, w1.shape,
                                        ("NCHW", "OIHW", "NCHW"))
    y = jax.lax.conv_general_dilated(x_nchw, w1, (1, 1), ((1, 1), (1, 1)),
                                     dimension_numbers=dn)
    y = jax.nn.relu(y + b1.reshape(1, -1, 1, 1))
    y = jax.lax.conv_general_dilated(y, w2, (1, 1), ((1, 1), (1, 1)),
                                     dimension_numbers=dn)
    y = y + b2.reshape(1, -1, 1, 1)
    return jax.nn.relu(x_nchw + y)


if __name__ == "__main__":
    N, C, H, W = 2, 8, 16, 16

    key = jax.random.PRNGKey(0)
    kx, kw1, kb1, kw2, kb2 = jax.random.split(key, 5)

    # PyTorch-like uniform init scale: U(-1/sqrt(fan_in), +1/sqrt(fan_in)).
    fan_in = C * 3 * 3
    bound = 1.0 / (fan_in ** 0.5)
    x = jax.random.normal(kx, (N, C, H, W), jnp.float32)
    w1 = jax.random.uniform(kw1, (C, C, 3, 3), jnp.float32, -bound, bound)
    b1 = jax.random.uniform(kb1, (C,), jnp.float32, -bound, bound)
    w2 = jax.random.uniform(kw2, (C, C, 3, 3), jnp.float32, -bound, bound)
    b2 = jax.random.uniform(kb2, (C,), jnp.float32, -bound, bound)

    out = residual_block_pallas(x, w1, b1, w2, b2)
    out = jax.block_until_ready(out)

    ref = jax.block_until_ready(residual_block_ref(x, w1, b1, w2, b2))
    assert out.shape == (N, C, H, W)
    assert jnp.allclose(out, ref, atol=1e-4, rtol=1e-4), \
        f"max err = {jnp.max(jnp.abs(out - ref))}"

    print("KERNEL_OK")
</pallas_src>

<mosaic_0001>
module attributes {stable_mosaic.version = 11 : i64} {
  func.func @_residual_block_kernel(%arg0: i32, %arg1: memref<2x8x256xf32, #tpu.memory_space<vmem>>, %arg2: memref<8x8x512xf32, #tpu.memory_space<vmem>>, %arg3: memref<8x72xf32, #tpu.memory_space<vmem>>, %arg4: memref<8x1xf32, #tpu.memory_space<vmem>>, %arg5: memref<8x72xf32, #tpu.memory_space<vmem>>, %arg6: memref<8x1xf32, #tpu.memory_space<vmem>>, %arg7: memref<2x8x256xf32, #tpu.memory_space<vmem>>) attributes {dimension_semantics = [#tpu.dimension_semantics<arbitrary>], iteration_bounds = array<i64: 1>, scalar_prefetch = 0 : i64, scratch_operands = 0 : i64, tpu.core_type = #tpu.core_type<tc>, window_params = [{pipeline_mode = #tpu.pipeline_mode<synchronous>, transform_indices = @transform_0, window_bounds = array<i64: 2, 8, 256>}, {pipeline_mode = #tpu.pipeline_mode<synchronous>, transform_indices = @transform_1, window_bounds = array<i64: 8, 8, 512>}, {pipeline_mode = #tpu.pipeline_mode<synchronous>, transform_indices = @transform_2, window_bounds = array<i64: 8, 72>}, {pipeline_mode = #tpu.pipeline_mode<synchronous>, transform_indices = @transform_3, window_bounds = array<i64: 8, 1>}, {pipeline_mode = #tpu.pipeline_mode<synchronous>, transform_indices = @transform_4, window_bounds = array<i64: 8, 72>}, {pipeline_mode = #tpu.pipeline_mode<synchronous>, transform_indices = @transform_5, window_bounds = array<i64: 8, 1>}, {pipeline_mode = #tpu.pipeline_mode<synchronous>, transform_indices = @transform_6, window_bounds = array<i64: 2, 8, 256>}]} {
    %c0 = arith.constant 0 : index
    %c0_0 = arith.constant 0 : index
    %c0_1 = arith.constant 0 : index
    %0 = vector.load %arg1[%c0, %c0_0, %c0_1] : memref<2x8x256xf32, #tpu.memory_space<vmem>>, vector<1x8x256xf32>
    %1 = vector.shape_cast %0 : vector<1x8x256xf32> to vector<8x256xf32>
    %c1 = arith.constant 1 : index
    %c0_2 = arith.constant 0 : index
    %c0_3 = arith.constant 0 : index
    %2 = vector.load %arg1[%c1, %c0_2, %c0_3] : memref<2x8x256xf32, #tpu.memory_space<vmem>>, vector<1x8x256xf32>
    %3 = vector.shape_cast %2 : vector<1x8x256xf32> to vector<8x256xf32>
    %4 = tpu.concatenate %1, %3 in 1 : vector<8x256xf32>, vector<8x256xf32> -> vector<8x512xf32>
    %c17_i32 = arith.constant 17 : i32
    %5 = tpu.dynamic_rotate %4 by %c17_i32 dim 1 : vector<8x512xf32>, i32 -> vector<8x512xf32>
    %c0_4 = arith.constant 0 : index
    %c0_5 = arith.constant 0 : index
    %c0_6 = arith.constant 0 : index
    %6 = vector.load %arg2[%c0_4, %c0_5, %c0_6] : memref<8x8x512xf32, #tpu.memory_space<vmem>>, vector<1x8x512xf32>
    %7 = vector.shape_cast %6 : vector<1x8x512xf32> to vector<8x512xf32>
    %8 = arith.mulf %5, %7 : vector<8x512xf32>
    %c16_i32 = arith.constant 16 : i32
    %9 = tpu.dynamic_rotate %4 by %c16_i32 dim 1 : vector<8x512xf32>, i32 -> vector<8x512xf32>
    %c1_7 = arith.constant 1 : index
    %c0_8 = arith.constant 0 : index
    %c0_9 = arith.constant 0 : index
    %10 = vector.load %arg2[%c1_7, %c0_8, %c0_9] : memref<8x8x512xf32, #tpu.memory_space<vmem>>, vector<1x8x512xf32>
    %11 = vector.shape_cast %10 : vector<1x8x512xf32> to vector<8x512xf32>
    %12 = arith.mulf %9, %11 : vector<8x512xf32>
    %c15_i32 = arith.constant 15 : i32
    %13 = tpu.dynamic_rotate %4 by %c15_i32 dim 1 : vector<8x512xf32>, i32 -> vector<8x512xf32>
    %c2 = arith.constant 2 : index
    %c0_10 = arith.constant 0 : index
    %c0_11 = arith.constant 0 : index
    %14 = vector.load %arg2[%c2, %c0_10, %c0_11] : memref<8x8x512xf32, #tpu.memory_space<vmem>>, vector<1x8x512xf32>
    %15 = vector.shape_cast %14 : vector<1x8x512xf32> to vector<8x512xf32>
    %16 = arith.mulf %13, %15 : vector<8x512xf32>
    %c1_i32 = arith.constant 1 : i32
    %17 = tpu.dynamic_rotate %4 by %c1_i32 dim 1 : vector<8x512xf32>, i32 -> vector<8x512xf32>
    %c3 = arith.constant 3 : index
    %c0_12 = arith.constant 0 : index
    %c0_13 = arith.constant 0 : index
    %18 = vector.load %arg2[%c3, %c0_12, %c0_13] : memref<8x8x512xf32, #tpu.memory_space<vmem>>, vector<1x8x512xf32>
    %19 = vector.shape_cast %18 : vector<1x8x512xf32> to vector<8x512xf32>
    %20 = arith.mulf %17, %19 : vector<8x512xf32>
    %c511_i32 = arith.constant 511 : i32
    %21 = tpu.dynamic_rotate %4 by %c511_i32 dim 1 : vector<8x512xf32>, i32 -> vector<8x512xf32>
    %c4 = arith.constant 4 : index
    %c0_14 = arith.constant 0 : index
    %c0_15 = arith.constant 0 : index
    %22 = vector.load %arg2[%c4, %c0_14, %c0_15] : memref<8x8x512xf32, #tpu.memory_space<vmem>>, vector<1x8x512xf32>
    %23 = vector.shape_cast %22 : vector<1x8x512xf32> to vector<8x512xf32>
    %24 = arith.mulf %21, %23 : vector<8x512xf32>
    %c497_i32 = arith.constant 497 : i32
    %25 = tpu.dynamic_rotate %4 by %c497_i32 dim 1 : vector<8x512xf32>, i32 -> vector<8x512xf32>
    %c5 = arith.constant 5 : index
    %c0_16 = arith.constant 0 : index
    %c0_17 = arith.constant 0 : index
    %26 = vector.load %arg2[%c5, %c0_16, %c0_17] : memref<8x8x512xf32, #tpu.memory_space<vmem>>, vector<1x8x512xf32>
    %27 = vector.shape_cast %26 : vector<1x8x512xf32> to vector<8x512xf32>
    %28 = arith.mulf %25, %27 : vector<8x512xf32>
    %c496_i32 = arith.constant 496 : i32
    %29 = tpu.dynamic_rotate %4 by %c496_i32 dim 1 : vector<8x512xf32>, i32 -> vector<8x512xf32>
    %c6 = arith.constant 6 : index
    %c0_18 = arith.constant 0 : index
    %c0_19 = arith.constant 0 : index
    %30 = vector.load %arg2[%c6, %c0_18, %c0_19] : memref<8x8x512xf32, #tpu.memory_space<vmem>>, vector<1x8x512xf32>
    %31 = vector.shape_cast %30 : vector<1x8x512xf32> to vector<8x512xf32>
    %32 = arith.mulf %29, %31 : vector<8x512xf32>
    %c495_i32 = arith.constant 495 : i32
    %33 = tpu.dynamic_rotate %4 by %c495_i32 dim 1 : vector<8x512xf32>, i32 -> vector<8x512xf32>
    %c7 = arith.constant 7 : index
    %c0_20 = arith.constant 0 : index
    %c0_21 = arith.constant 0 : index
    %34 = vector.load %arg2[%c7, %c0_20, %c0_21] : memref<8x8x512xf32, #tpu.memory_space<vmem>>, vector<1x8x512xf32>
    %35 = vector.shape_cast %34 : vector<1x8x512xf32> to vector<8x512xf32>
    %36 = arith.mulf %33, %35 : vector<8x512xf32>
    %37 = tpu.concatenate %8, %12, %16, %20, %4, %24, %28, %32, %36 in 0 : vector<8x512xf32>, vector<8x512xf32>, vector<8x512xf32>, vector<8x512xf32>, vector<8x512xf32>, vector<8x512xf32>, vector<8x512xf32>, vector<8x512xf32>, vector<8x512xf32> -> vector<72x512xf32>
    %c0_22 = arith.constant 0 : index
    %c0_23 = arith.constant 0 : index
    %38 = vector.load %arg3[%c0_22, %c0_23] : memref<8x72xf32, #tpu.memory_space<vmem>>, vector<8x72xf32>
    %cst = arith.constant dense<0.000000e+00> : vector<8x512xf32>
    %39 = tpu.matmul %38, %37, %cst {dimension_numbers = #tpu.dot_dimension_numbers<[1], [0], [0], [1], [0, 0, 1, 1], [], []>} : vector<8x72xf32>, vector<72x512xf32>, vector<8x512xf32> -> vector<8x512xf32>
    %c0_24 = arith.constant 0 : index
    %c0_25 = arith.constant 0 : index
    %40 = vector.load %arg4[%c0_24, %c0_25] : memref<8x1xf32, #tpu.memory_space<vmem>>, vector<8x1xf32>
    %41 = vector.broadcast %40 : vector<8x1xf32> to vector<8x512xf32>
    %42 = arith.addf %39, %41 : vector<8x512xf32>
    %cst_26 = arith.constant 0.000000e+00 : f32
    %43 = vector.broadcast %cst_26 : f32 to vector<8x512xf32>
    %44 = arith.maximumf %42, %43 : vector<8x512xf32>
    %c17_i32_27 = arith.constant 17 : i32
    %45 = tpu.dynamic_rotate %44 by %c17_i32_27 dim 1 : vector<8x512xf32>, i32 -> vector<8x512xf32>
    %c0_28 = arith.constant 0 : index
    %c0_29 = arith.constant 0 : index
    %c0_30 = arith.constant 0 : index
    %46 = vector.load %arg2[%c0_28, %c0_29, %c0_30] : memref<8x8x512xf32, #tpu.memory_space<vmem>>, vector<1x8x512xf32>
    %47 = vector.shape_cast %46 : vector<1x8x512xf32> to vector<8x512xf32>
    %48 = arith.mulf %45, %47 : vector<8x512xf32>
    %c16_i32_31 = arith.constant 16 : i32
    %49 = tpu.dynamic_rotate %44 by %c16_i32_31 dim 1 : vector<8x512xf32>, i32 -> vector<8x512xf32>
    %c1_32 = arith.constant 1 : index
    %c0_33 = arith.constant 0 : index
    %c0_34 = arith.constant 0 : index
    %50 = vector.load %arg2[%c1_32, %c0_33, %c0_34] : memref<8x8x512xf32, #tpu.memory_space<vmem>>, vector<1x8x512xf32>
    %51 = vector.shape_cast %50 : vector<1x8x512xf32> to vector<8x512xf32>
    %52 = arith.mulf %49, %51 : vector<8x512xf32>
    %c15_i32_35 = arith.constant 15 : i32
    %53 = tpu.dynamic_rotate %44 by %c15_i32_35 dim 1 : vector<8x512xf32>, i32 -> vector<8x512xf32>
    %c2_36 = arith.constant 2 : index
    %c0_37 = arith.constant 0 : index
    %c0_38 = arith.constant 0 : index
    %54 = vector.load %arg2[%c2_36, %c0_37, %c0_38] : memref<8x8x512xf32, #tpu.memory_space<vmem>>, vector<1x8x512xf32>
    %55 = vector.shape_cast %54 : vector<1x8x512xf32> to vector<8x512xf32>
    %56 = arith.mulf %53, %55 : vector<8x512xf32>
    %c1_i32_39 = arith.constant 1 : i32
    %57 = tpu.dynamic_rotate %44 by %c1_i32_39 dim 1 : vector<8x512xf32>, i32 -> vector<8x512xf32>
    %c3_40 = arith.constant 3 : index
    %c0_41 = arith.constant 0 : index
    %c0_42 = arith.constant 0 : index
    %58 = vector.load %arg2[%c3_40, %c0_41, %c0_42] : memref<8x8x512xf32, #tpu.memory_space<vmem>>, vector<1x8x512xf32>
    %59 = vector.shape_cast %58 : vector<1x8x512xf32> to vector<8x512xf32>
    %60 = arith.mulf %57, %59 : vector<8x512xf32>
    %c511_i32_43 = arith.constant 511 : i32
    %61 = tpu.dynamic_rotate %44 by %c511_i32_43 dim 1 : vector<8x512xf32>, i32 -> vector<8x512xf32>
    %c4_44 = arith.constant 4 : index
    %c0_45 = arith.constant 0 : index
    %c0_46 = arith.constant 0 : index
    %62 = vector.load %arg2[%c4_44, %c0_45, %c0_46] : memref<8x8x512xf32, #tpu.memory_space<vmem>>, vector<1x8x512xf32>
    %63 = vector.shape_cast %62 : vector<1x8x512xf32> to vector<8x512xf32>
    %64 = arith.mulf %61, %63 : vector<8x512xf32>
    %c497_i32_47 = arith.constant 497 : i32
    %65 = tpu.dynamic_rotate %44 by %c497_i32_47 dim 1 : vector<8x512xf32>, i32 -> vector<8x512xf32>
    %c5_48 = arith.constant 5 : index
    %c0_49 = arith.constant 0 : index
    %c0_50 = arith.constant 0 : index
    %66 = vector.load %arg2[%c5_48, %c0_49, %c0_50] : memref<8x8x512xf32, #tpu.memory_space<vmem>>, vector<1x8x512xf32>
    %67 = vector.shape_cast %66 : vector<1x8x512xf32> to vector<8x512xf32>
    %68 = arith.mulf %65, %67 : vector<8x512xf32>
    %c496_i32_51 = arith.constant 496 : i32
    %69 = tpu.dynamic_rotate %44 by %c496_i32_51 dim 1 : vector<8x512xf32>, i32 -> vector<8x512xf32>
    %c6_52 = arith.constant 6 : index
    %c0_53 = arith.constant 0 : index
    %c0_54 = arith.constant 0 : index
    %70 = vector.load %arg2[%c6_52, %c0_53, %c0_54] : memref<8x8x512xf32, #tpu.memory_space<vmem>>, vector<1x8x512xf32>
    %71 = vector.shape_cast %70 : vector<1x8x512xf32> to vector<8x512xf32>
    %72 = arith.mulf %69, %71 : vector<8x512xf32>
    %c495_i32_55 = arith.constant 495 : i32
    %73 = tpu.dynamic_rotate %44 by %c495_i32_55 dim 1 : vector<8x512xf32>, i32 -> vector<8x512xf32>
    %c7_56 = arith.constant 7 : index
    %c0_57 = arith.constant 0 : index
    %c0_58 = arith.constant 0 : index
    %74 = vector.load %arg2[%c7_56, %c0_57, %c0_58] : memref<8x8x512xf32, #tpu.memory_space<vmem>>, vector<1x8x512xf32>
    %75 = vector.shape_cast %74 : vector<1x8x512xf32> to vector<8x512xf32>
    %76 = arith.mulf %73, %75 : vector<8x512xf32>
    %77 = tpu.concatenate %48, %52, %56, %60, %44, %64, %68, %72, %76 in 0 : vector<8x512xf32>, vector<8x512xf32>, vector<8x512xf32>, vector<8x512xf32>, vector<8x512xf32>, vector<8x512xf32>, vector<8x512xf32>, vector<8x512xf32>, vector<8x512xf32> -> vector<72x512xf32>
    %c0_59 = arith.constant 0 : index
    %c0_60 = arith.constant 0 : index
    %78 = vector.load %arg5[%c0_59, %c0_60] : memref<8x72xf32, #tpu.memory_space<vmem>>, vector<8x72xf32>
    %cst_61 = arith.constant dense<0.000000e+00> : vector<8x512xf32>
    %79 = tpu.matmul %78, %77, %cst_61 {dimension_numbers = #tpu.dot_dimension_numbers<[1], [0], [0], [1], [0, 0, 1, 1], [], []>} : vector<8x72xf32>, vector<72x512xf32>, vector<8x512xf32> -> vector<8x512xf32>
    %c0_62 = arith.constant 0 : index
    %c0_63 = arith.constant 0 : index
    %80 = vector.load %arg6[%c0_62, %c0_63] : memref<8x1xf32, #tpu.memory_space<vmem>>, vector<8x1xf32>
    %81 = vector.broadcast %80 : vector<8x1xf32> to vector<8x512xf32>
    %82 = arith.addf %79, %81 : vector<8x512xf32>
    %83 = arith.addf %4, %82 : vector<8x512xf32>
    %cst_64 = arith.constant 0.000000e+00 : f32
    %84 = vector.broadcast %cst_64 : f32 to vector<8x512xf32>
    %85 = arith.maximumf %83, %84 : vector<8x512xf32>
    %86 = vector.extract_strided_slice %85 {offsets = [0, 0], sizes = [8, 256], strides = [1, 1]} : vector<8x512xf32> to vector<8x256xf32>
    %c0_65 = arith.constant 0 : index
    %c0_66 = arith.constant 0 : index
    %c0_67 = arith.constant 0 : index
    %87 = vector.load %arg7[%c0_65, %c0_66, %c0_67] : memref<2x8x256xf32, #tpu.memory_space<vmem>>, vector<1x8x256xf32>
    %88 = vector.shape_cast %87 : vector<1x8x256xf32> to vector<8x256xf32>
    %89 = vector.shape_cast %86 : vector<8x256xf32> to vector<1x8x256xf32>
    tpu.vector_store %arg7[%c0_65, %c0_66, %c0_67], %89 {strides = array<i32>} : memref<2x8x256xf32, #tpu.memory_space<vmem>>, vector<1x8x256xf32>,
    %90 = vector.extract_strided_slice %85 {offsets = [0, 256], sizes = [8, 256], strides = [1, 1]} : vector<8x512xf32> to vector<8x256xf32>
    %c1_68 = arith.constant 1 : index
    %c0_69 = arith.constant 0 : index
    %c0_70 = arith.constant 0 : index
    %91 = vector.load %arg7[%c1_68, %c0_69, %c0_70] : memref<2x8x256xf32, #tpu.memory_space<vmem>>, vector<1x8x256xf32>
    %92 = vector.shape_cast %91 : vector<1x8x256xf32> to vector<8x256xf32>
    %93 = vector.shape_cast %90 : vector<8x256xf32> to vector<1x8x256xf32>
    tpu.vector_store %arg7[%c1_68, %c0_69, %c0_70], %93 {strides = array<i32>} : memref<2x8x256xf32, #tpu.memory_space<vmem>>, vector<1x8x256xf32>,
    return
  }
  func.func @transform_0(%arg0: i32) -> (i32, i32, i32) {
    %c0_i32 = arith.constant 0 : i32
    %c0_i32_0 = arith.constant 0 : i32
    %c0_i32_1 = arith.constant 0 : i32
    %c0_i32_2 = arith.constant 0 : i32
    return %c0_i32, %c0_i32_0, %c0_i32_1 : i32, i32, i32
  }
  func.func @transform_1(%arg0: i32) -> (i32, i32, i32) {
    %c0_i32 = arith.constant 0 : i32
    %c0_i32_0 = arith.constant 0 : i32
    %c0_i32_1 = arith.constant 0 : i32
    %c0_i32_2 = arith.constant 0 : i32
    return %c0_i32, %c0_i32_0, %c0_i32_1 : i32, i32, i32
  }
  func.func @transform_2(%arg0: i32) -> (i32, i32) {
    %c0_i32 = arith.constant 0 : i32
    %c0_i32_0 = arith.constant 0 : i32
    %c0_i32_1 = arith.constant 0 : i32
    return %c0_i32, %c0_i32_0 : i32, i32
  }
  func.func @transform_3(%arg0: i32) -> (i32, i32) {
    %c0_i32 = arith.constant 0 : i32
    %c0_i32_0 = arith.constant 0 : i32
    %c0_i32_1 = arith.constant 0 : i32
    return %c0_i32, %c0_i32_0 : i32, i32
  }
  func.func @transform_4(%arg0: i32) -> (i32, i32) {
    %c0_i32 = arith.constant 0 : i32
    %c0_i32_0 = arith.constant 0 : i32
    %c0_i32_1 = arith.constant 0 : i32
    return %c0_i32, %c0_i32_0 : i32, i32
  }
  func.func @transform_5(%arg0: i32) -> (i32, i32) {
    %c0_i32 = arith.constant 0 : i32
    %c0_i32_0 = arith.constant 0 : i32
    %c0_i32_1 = arith.constant 0 : i32
    return %c0_i32, %c0_i32_0 : i32, i32
  }
  func.func @transform_6(%arg0: i32) -> (i32, i32, i32) {
    %c0_i32 = arith.constant 0 : i32
    %c0_i32_0 = arith.constant 0 : i32
    %c0_i32_1 = arith.constant 0 : i32
    %c0_i32_2 = arith.constant 0 : i32
    return %c0_i32, %c0_i32_0, %c0_i32_1 : i32, i32, i32
  }
}

</mosaic_0001>

<llo_original>
// kernel: tpu_custom_call.1
$region0: #{tpu_custom_call.1}
  #allocation0 [shape = 'u32[]', space=smem, size = 0x4, offset = 0x4, fixed_abs, tag = 'smem constant byte address 0x4 - core index']
  #allocation1 [shape = 'u32[144,128]{1,0:T(1,128)}', space=vmem, size = 0x12000, scoped, tag = 'internal scratch']
  %s0 = inlined_call_operand.hbm [shape: f32[2,8,256], index: 0, kind: input, shape index: {}]
  %s1 = inlined_call_operand.hbm [shape: f32[8,8,512], index: 1, kind: input, shape index: {}]
  %s2 = inlined_call_operand.vmem [shape: f32[8,72], index: 2, kind: input, shape index: {}]
  %s3 = inlined_call_operand.vmem [shape: f32[8,1], index: 3, kind: input, shape index: {}]
  %s4 = inlined_call_operand.vmem [shape: f32[8,72], index: 4, kind: input, shape index: {}]
  %s5 = inlined_call_operand.vmem [shape: f32[8,1], index: 5, kind: input, shape index: {}]
  %s6 = inlined_call_operand.hbm [shape: f32[2,8,256], index: 6, kind: output, shape index: {}]
  %s7 = sld [smem:[#allocation0]]
  $region42: #{tpu_custom_call.1} parent=0
    _
  %s9 = ssub.s32 1, %s7
  %s10 = scalar_select 0, %s9, %s7
  $region1: #{tpu_custom_call.1} parent=0
    #allocation2 [shape = 'u8[16384]{0}', space=vmem, size = 0x4000, scoped, tag = 'input window, operand 0, single buffered']
    #allocation3 [shape = 's32[1]{0}', space=sflag, size = 0x4, scoped, tag = 'scoped memory for tpu_custom_call.1']
    #allocation4 [shape = 's32[1]{0}', space=sflag, size = 0x4, scoped, tag = 'scoped memory for tpu_custom_call.1']
    #allocation5 [shape = 'u8[131072]{0}', space=vmem, size = 0x20000, scoped, tag = 'input window, operand 1, single buffered']
    #allocation6 [shape = 's32[1]{0}', space=sflag, size = 0x4, scoped, tag = 'scoped memory for tpu_custom_call.1']
    #allocation7 [shape = 'u8[16384]{0}', space=vmem, size = 0x4000, scoped, tag = 'output window, operand 0, single buffered']
    %11 = vsyncpa [#allocation3], 0
    %12 = vsyncpa [#allocation6], 0
    %13 = vsyncpa [#allocation4], 0
    // Predicated region
    $region2: #{tpu_custom_call.1} parent=1 // pred_check
      _
    $region3: #{tpu_custom_call.1} parent=1 // pred_check_branch
      %15 = sbr.rel (0) target = $region5
    $region4: #{tpu_custom_call.1} parent=1 // pred_region
      %s17 = ssub.s32 512, 512
      %18 = vsyncadd [#allocation3], %s17
      %s19 = sshll.u32 [#allocation2], 4
      %s20 = int_to_ptr.vmem [resolvable:$true] %s19
      %25 = dma.hbm_to_vmem [thread:$0]  %s0, 512, %s20, [#allocation3], 256, 256, 16
    $region5: #{tpu_custom_call.1} parent=1 // pred_fallthru
      _
    // Predicated region
    $region6: #{tpu_custom_call.1} parent=1 // pred_check
      _
    $region7: #{tpu_custom_call.1} parent=1 // pred_check_branch
      %27 = sbr.rel (0) target = $region9
    $region8: #{tpu_custom_call.1} parent=1 // pred_region
      %s29 = ssub.s32 4096, 4096
      %30 = vsyncadd [#allocation6], %s29
      %s31 = sshll.u32 [#allocation5], 4
      %s32 = int_to_ptr.vmem [resolvable:$true] %s31
      %37 = dma.hbm_to_vmem [thread:$0]  %s1, 4096, %s32, [#allocation6], 512, 512, 32
    $region9: #{tpu_custom_call.1} parent=1 // pred_fallthru
      _
    // Predicated region
    $region10: #{tpu_custom_call.1} parent=1 // pred_check
      _
    $region11: #{tpu_custom_call.1} parent=1 // pred_check_branch
      %39 = sbr.rel (0) target = $region13
    $region12: #{tpu_custom_call.1} parent=1 // pred_region
      _
    $region13: #{tpu_custom_call.1} parent=1 // pred_fallthru
      _
    // Predicated region
    $region14: #{tpu_custom_call.1} parent=1 // pred_check
      _
    $region15: #{tpu_custom_call.1} parent=1 // pred_check_branch
      %41 = sbr.rel (0) target = $region17
    $region16: #{tpu_custom_call.1} parent=1 // pred_region
      _
    $region17: #{tpu_custom_call.1} parent=1 // pred_fallthru
      _
    // Predicated region
    $region18: #{tpu_custom_call.1} parent=1 // pred_check
      _
    $region19: #{tpu_custom_call.1} parent=1 // pred_check_branch
      %43 = sbr.rel (0) target = $region21
    $region20: #{tpu_custom_call.1} parent=1 // pred_region
      _
    $region21: #{tpu_custom_call.1} parent=1 // pred_fallthru
      _
    // Predicated region
    $region22: #{tpu_custom_call.1} parent=1 // pred_check
      _
    $region23: #{tpu_custom_call.1} parent=1 // pred_check_branch
      %45 = sbr.rel (0) target = $region25
    $region24: #{tpu_custom_call.1} parent=1 // pred_region
      _
    $region25: #{tpu_custom_call.1} parent=1 // pred_fallthru
      _
    // Predicated region
    $region26: #{tpu_custom_call.1} parent=1 // pred_check
      _
    $region27: #{tpu_custom_call.1} parent=1 // pred_check_branch
      %47 = sbr.rel (0) target = $region29
    $region28: #{tpu_custom_call.1} parent=1 // pred_region
      %48 = dma.done [#allocation3], 512
    $region29: #{tpu_custom_call.1} parent=1 // pred_fallthru
      _
    // Predicated region
    $region30: #{tpu_custom_call.1} parent=1 // pred_check
      _
    $region31: #{tpu_custom_call.1} parent=1 // pred_check_branch
      %50 = sbr.rel (0) target = $region33
    $region32: #{tpu_custom_call.1} parent=1 // pred_region
      %51 = dma.done [#allocation6], 4096
    $region33: #{tpu_custom_call.1} parent=1 // pred_fallthru
      _
    %v52 = vld [vmem:[#allocation2] sm:$0xff]
    %v53 = vld [vmem:[#allocation2 + $0x8] sm:$0xff]
    %s54 = scalar_lea.vmem [#allocation2], 16
    %v55 = vld [vmem:[%s54] sm:$0xff]
    %v56 = vld [vmem:[%s54 + $0x8] sm:$0xff]
    %57 = vrot.lane.b32.xlu0 %v52, 17
    %v58 = vpop.permute.xlu0 %57
    %59 = vrot.lane.b32.xlu0 %v53, 17
    %v60 = vpop.permute.xlu0 %59
    %61 = vrot.lane.b32.xlu0 %v55, 17
    %v62 = vpop.permute.xlu0 %61
    %63 = vrot.lane.b32.xlu0 %v56, 17
    %v64 = vpop.permute.xlu0 %63
    %v65 = vlaneseq
    %v66 = vand.u32 %v65, 127
    %vm67 = vcmp.lt.s32.totalorder %v66, 17
    %v68 = vsel %vm67, %v62, %v64
    %v69 = vsel %vm67, %v60, %v62
    %v70 = vsel %vm67, %v58, %v60
    %v71 = vsel %vm67, %v64, %v58
    %v72 = vld [vmem:[#allocation5] sm:$0xff]
    %v73 = vld [vmem:[#allocation5 + $0x8] sm:$0xff]
    %v74 = vld [vmem:[#allocation5 + $0x10] sm:$0xff]
    %v75 = vld [vmem:[#allocation5 + $0x18] sm:$0xff]
    %v76 = vmul.f32 %v71, %v72
    %v77 = vmul.f32 %v70, %v73
    %v78 = vmul.f32 %v69, %v74
    %v79 = vmul.f32 %v68, %v75
    %80 = vrot.lane.b32.xlu0 %v52, 16
    %v81 = vpop.permute.xlu0 %80
    %82 = vrot.lane.b32.xlu0 %v53, 16
    %v83 = vpop.permute.xlu0 %82
    %84 = vrot.lane.b32.xlu0 %v55, 16
    %v85 = vpop.permute.xlu0 %84
    %86 = vrot.lane.b32.xlu0 %v56, 16
    %v87 = vpop.permute.xlu0 %86
    %vm88 = vcmp.lt.s32.totalorder %v66, 16
    %v89 = vsel %vm88, %v85, %v87
    %v90 = vsel %vm88, %v83, %v85
    %v91 = vsel %vm88, %v81, %v83
    %v92 = vsel %vm88, %v87, %v81
    %s93 = scalar_lea.vmem [#allocation5], 32
    %v94 = vld [vmem:[%s93] sm:$0xff]
    %v95 = vld [vmem:[%s93 + $0x8] sm:$0xff]
    %v96 = vld [vmem:[%s93 + $0x10] sm:$0xff]
    %v97 = vld [vmem:[%s93 + $0x18] sm:$0xff]
    %v98 = vmul.f32 %v92, %v94
    %v99 = vmul.f32 %v91, %v95
    %v100 = vmul.f32 %v90, %v96
    %v101 = vmul.f32 %v89, %v97
    %102 = vrot.lane.b32.xlu0 %v52, 15
    %v103 = vpop.permute.xlu0 %102
    %104 = vrot.lane.b32.xlu0 %v53, 15
    %v105 = vpop.permute.xlu0 %104
    %106 = vrot.lane.b32.xlu0 %v55, 15
    %v107 = vpop.permute.xlu0 %106
    %108 = vrot.lane.b32.xlu0 %v56, 15
    %v109 = vpop.permute.xlu0 %108
    %vm110 = vcmp.lt.s32.totalorder %v66, 15
    %v111 = vsel %vm110, %v107, %v109
    %v112 = vsel %vm110, %v105, %v107
    %v113 = vsel %vm110, %v103, %v105
    %v114 = vsel %vm110, %v109, %v103
    %s115 = scalar_lea.vmem [#allocation5], 64
    %v116 = vld [vmem:[%s115] sm:$0xff]
    %v117 = vld [vmem:[%s115 + $0x8] sm:$0xff]
    %v118 = vld [vmem:[%s115 + $0x10] sm:$0xff]
    %v119 = vld [vmem:[%s115 + $0x18] sm:$0xff]
    %v120 = vmul.f32 %v114, %v116
    %v121 = vmul.f32 %v113, %v117
    %v122 = vmul.f32 %v112, %v118
    %v123 = vmul.f32 %v111, %v119
    %124 = vrot.lane.b32.xlu0 %v52, 1
    %v125 = vpop.permute.xlu0 %124
    %126 = vrot.lane.b32.xlu0 %v53, 1
    %v127 = vpop.permute.xlu0 %126
    %128 = vrot.lane.b32.xlu0 %v55, 1
    %v129 = vpop.permute.xlu0 %128
    %130 = vrot.lane.b32.xlu0 %v56, 1
    %v131 = vpop.permute.xlu0 %130
    %vm132 = vcmp.lt.s32.totalorder %v66, 1
    %v133 = vsel %vm132, %v129, %v131
    %v134 = vsel %vm132, %v127, %v129
    %v135 = vsel %vm132, %v125, %v127
    %v136 = vsel %vm132, %v131, %v125
    %s137 = scalar_lea.vmem [#allocation5], 96
    %v138 = vld [vmem:[%s137] sm:$0xff]
    %v139 = vld [vmem:[%s137 + $0x8] sm:$0xff]
    %v140 = vld [vmem:[%s137 + $0x10] sm:$0xff]
    %v141 = vld [vmem:[%s137 + $0x18] sm:$0xff]
    %v142 = vmul.f32 %v136, %v138
    %v143 = vmul.f32 %v135, %v139
    %v144 = vmul.f32 %v134, %v140
    %v145 = vmul.f32 %v133, %v141
    %146 = vrot.lane.b32.xlu0 %v52, 127
    %v147 = vpop.permute.xlu0 %146
    %148 = vrot.lane.b32.xlu0 %v53, 127
    %v149 = vpop.permute.xlu0 %148
    %150 = vrot.lane.b32.xlu0 %v55, 127
    %v151 = vpop.permute.xlu0 %150
    %152 = vrot.lane.b32.xlu0 %v56, 127
    %v153 = vpop.permute.xlu0 %152
    %vm154 = vcmp.lt.s32.totalorder %v66, 127
    %v155 = vsel %vm154, %v151, %v153
    %v156 = vsel %vm154, %v149, %v151
    %v157 = vsel %vm154, %v147, %v149
    %v158 = vsel %vm154, %v153, %v147
    %s159 = scalar_lea.vmem [#allocation5], 128
    %v160 = vld [vmem:[%s159] sm:$0xff]
    %v161 = vld [vmem:[%s159 + $0x8] sm:$0xff]
    %v162 = vld [vmem:[%s159 + $0x10] sm:$0xff]
    %v163 = vld [vmem:[%s159 + $0x18] sm:$0xff]
    %v164 = vmul.f32 %v157, %v160
    %v165 = vmul.f32 %v156, %v161
    %v166 = vmul.f32 %v155, %v162
    %v167 = vmul.f32 %v158, %v163
    %168 = vrot.lane.b32.xlu0 %v52, 113
    %v169 = vpop.permute.xlu0 %168
    %170 = vrot.lane.b32.xlu0 %v53, 113
    %v171 = vpop.permute.xlu0 %170
    %172 = vrot.lane.b32.xlu0 %v55, 113
    %v173 = vpop.permute.xlu0 %172
    %174 = vrot.lane.b32.xlu0 %v56, 113
    %v175 = vpop.permute.xlu0 %174
    %vm176 = vcmp.lt.s32.totalorder %v66, 113
    %v177 = vsel %vm176, %v173, %v175
    %v178 = vsel %vm176, %v171, %v173
    %v179 = vsel %vm176, %v169, %v171
    %v180 = vsel %vm176, %v175, %v169
    %s181 = scalar_lea.vmem [#allocation5], 160
    %v182 = vld [vmem:[%s181] sm:$0xff]
    %v183 = vld [vmem:[%s181 + $0x8] sm:$0xff]
    %v184 = vld [vmem:[%s181 + $0x10] sm:$0xff]
    %v185 = vld [vmem:[%s181 + $0x18] sm:$0xff]
    %v186 = vmul.f32 %v179, %v182
    %v187 = vmul.f32 %v178, %v183
    %v188 = vmul.f32 %v177, %v184
    %v189 = vmul.f32 %v180, %v185
    %190 = vrot.lane.b32.xlu0 %v52, 112
    %v191 = vpop.permute.xlu0 %190
    %192 = vrot.lane.b32.xlu0 %v53, 112
    %v193 = vpop.permute.xlu0 %192
    %194 = vrot.lane.b32.xlu0 %v55, 112
    %v195 = vpop.permute.xlu0 %194
    %196 = vrot.lane.b32.xlu0 %v56, 112
    %v197 = vpop.permute.xlu0 %196
    %vm198 = vcmp.lt.s32.totalorder %v66, 112
    %v199 = vsel %vm198, %v195, %v197
    %v200 = vsel %vm198, %v193, %v195
    %v201 = vsel %vm198, %v191, %v193
    %v202 = vsel %vm198, %v197, %v191
    %s203 = scalar_lea.vmem [#allocation5], 192
    %v204 = vld [vmem:[%s203] sm:$0xff]
    %v205 = vld [vmem:[%s203 + $0x8] sm:$0xff]
    %v206 = vld [vmem:[%s203 + $0x10] sm:$0xff]
    %v207 = vld [vmem:[%s203 + $0x18] sm:$0xff]
    %v208 = vmul.f32 %v201, %v204
    %v209 = vmul.f32 %v200, %v205
    %v210 = vmul.f32 %v199, %v206
    %v211 = vmul.f32 %v202, %v207
    %212 = vrot.lane.b32.xlu0 %v52, 111
    %v213 = vpop.permute.xlu0 %212
    %214 = vrot.lane.b32.xlu0 %v53, 111
    %v215 = vpop.permute.xlu0 %214
    %216 = vrot.lane.b32.xlu0 %v55, 111
    %v217 = vpop.permute.xlu0 %216
    %218 = vrot.lane.b32.xlu0 %v56, 111
    %v219 = vpop.permute.xlu0 %218
    %vm220 = vcmp.lt.s32.totalorder %v66, 111
    %v221 = vsel %vm220, %v217, %v219
    %v222 = vsel %vm220, %v215, %v217
    %v223 = vsel %vm220, %v213, %v215
    %v224 = vsel %vm220, %v219, %v213
    %s225 = scalar_lea.vmem [#allocation5], 224
    %v226 = vld [vmem:[%s225] sm:$0xff]
    %v227 = vld [vmem:[%s225 + $0x8] sm:$0xff]
    %v228 = vld [vmem:[%s225 + $0x10] sm:$0xff]
    %v229 = vld [vmem:[%s225 + $0x18] sm:$0xff]
    %v230 = vmul.f32 %v223, %v226
    %v231 = vmul.f32 %v222, %v227
    %v232 = vmul.f32 %v221, %v228
    %v233 = vmul.f32 %v224, %v229
    %v234 = vld [vmem:[%s2] sm:$0xff]
    %v235 = vld [vmem:[%s3] sm:$0xff]
    %237 = vset.pattern.permute.xlu0 0
    %238 = vperm.xlu0 %237, %v235
    %v239 = vpop.permute.xlu0 %238
    %vm241 = vcmask 588800
    %v243 = vsel %vm241, %v234, 0
    %245 = vmatprep.subr.mxu0 %v77
    %246 = vmatpush1.msra.mxu0 %v76
    %247 = vmatprep.subr.mxu0 %v99
    %248 = vmatpush1.msra.mxu0 %v98
    %249 = vmatprep.subr.mxu0 %v121
    %250 = vmatpush1.msra.mxu0 %v120
    %251 = vmatprep.subr.mxu0 %v143
    %252 = vmatpush1.msra.mxu0 %v142
    %253 = vmatprep.subr.mxu0 %v53
    %254 = vmatpush1.msra.mxu0 %v52
    %255 = vmatprep.subr.mxu0 %v165
    %256 = vmatpush1.msra.mxu0 %v164
    %257 = vmatprep.subr.mxu0 %v187
    %258 = vmatpush1.msra.mxu0 %v186
    %259 = vmatprep.subr.mxu0 %v209
    %260 = vmatpush1.msra.mxu0 %v208
    %261 = vmatprep.subr.mxu0 %v231
    %262 = vmatpush1.msra.mxu0 %v230
    %263 = vmatprep.subr.mxu0 0.0
    %264 = vmatpush1.msra.mxu0 0.0
    %265 = vmatprep.subr.mxu0 0.0
    %266 = vmatpush1.msra.mxu0 0.0
    %267 = vmatprep.subr.mxu0 0.0
    %268 = vmatpush1.msra.mxu0 0.0
    %269 = vmatprep.subr.mxu0 0.0
    %270 = vmatpush1.msra.mxu0 0.0
    %271 = vmatprep.subr.mxu0 0.0
    %272 = vmatpush1.msra.mxu0 0.0
    %273 = vmatprep.subr.mxu0 0.0
    %274 = vmatpush1.msra.mxu0 0.0
    %275 = vmatprep.subr.mxu0 0.0
    %276 = vmatpush1.msra.mxu0 0.0
    %277 = vmatprep.subr.mxu0 0.0
    %278 = vmatpush1.msra.mxu0 0.0
    %279 = vmatprep.subr.mxu0 0.0
    %280 = vmatpush1.msra.mxu0 0.0
    %281 = vmatprep.subr.mxu0 0.0
    %282 = vmatpush1.msra.mxu0 0.0
    %283 = vmatprep.subr.mxu0 0.0
    %284 = vmatpush1.msra.mxu0 0.0
    %285 = vmatprep.subr.mxu0 0.0
    %286 = vmatpush1.msra.mxu0 0.0
    %287 = vmatprep.subr.mxu0 0.0
    %288 = vmatpush1.msra.mxu0 0.0
    %289 = vmatprep.subr.mxu0 0.0
    %290 = vmatpush1.msra.mxu0 0.0
    %291 = vmatprep.subr.mxu0 0.0
    %292 = vmatpush1.msra.mxu0 0.0
    %293 = vmatprep.subr.mxu0 0.0
    %294 = vmatpush1.msra.mxu0 0.0
    %295 = vmatprep.subr.mxu0 0.0
    %296 = vmatpush1.msra.mxu0 0.0
    %297 = vmatprep.subr.mxu0 0.0
    %298 = vmatpush1.msra.mxu0 0.0
    %299 = vmatprep.subr.mxu0 0.0
    %300 = vmatpush1.msra.mxu0 0.0
    %301 = vmatprep.subr.mxu0 0.0
    %302 = vmatpush1.msra.mxu0 0.0
    %303 = vmatprep.subr.mxu0 0.0
    %304 = vmatpush1.msra.mxu0 0.0
    %305 = vmatprep.subr.mxu0 0.0
    %306 = vmatpush1.msra.mxu0 0.0
    %307 = vmatprep.subr.mxu0 0.0
    %308 = vmatpush1.msra.mxu0 0.0
    %309 = vmatprep.mubr.f32.mxu0 0.0
    %310 = vmatmul.mubr.f32.gmra.mrb[0].mxu0 %v243
    %v311 = vpop.f32.mrb[0].mxu0
    %v312 = vadd.f32 %v239, %v311
    %v313 = vpop.f32.mrb[0].mxu0
    %v314 = vadd.f32 %v239, %v313
    %315 = vdwg.mxu0
    %316 = vmatprep.subr.mxu0 %v79
    %317 = vmatpush1.msra.mxu0 %v78
    %318 = vmatprep.subr.mxu0 %v101
    %319 = vmatpush1.msra.mxu0 %v100
    %320 = vmatprep.subr.mxu0 %v123
    %321 = vmatpush1.msra.mxu0 %v122
    %322 = vmatprep.subr.mxu0 %v145
    %323 = vmatpush1.msra.mxu0 %v144
    %324 = vmatprep.subr.mxu0 %v56
    %325 = vmatpush1.msra.mxu0 %v55
    %326 = vmatprep.subr.mxu0 %v167
    %327 = vmatpush1.msra.mxu0 %v166
    %328 = vmatprep.subr.mxu0 %v189
    %329 = vmatpush1.msra.mxu0 %v188
    %330 = vmatprep.subr.mxu0 %v211
    %331 = vmatpush1.msra.mxu0 %v210
    %332 = vmatprep.subr.mxu0 %v233
    %333 = vmatpush1.msra.mxu0 %v232
    %334 = vmatprep.subr.mxu0 0.0
    %335 = vmatpush1.msra.mxu0 0.0
    %336 = vmatprep.subr.mxu0 0.0
    %337 = vmatpush1.msra.mxu0 0.0
    %338 = vmatprep.subr.mxu0 0.0
    %339 = vmatpush1.msra.mxu0 0.0
    %340 = vmatprep.subr.mxu0 0.0
    %341 = vmatpush1.msra.mxu0 0.0
    %342 = vmatprep.subr.mxu0 0.0
    %343 = vmatpush1.msra.mxu0 0.0
    %344 = vmatprep.subr.mxu0 0.0
    %345 = vmatpush1.msra.mxu0 0.0
    %346 = vmatprep.subr.mxu0 0.0
    %347 = vmatpush1.msra.mxu0 0.0
    %348 = vmatprep.subr.mxu0 0.0
    %349 = vmatpush1.msra.mxu0 0.0
    %350 = vmatprep.subr.mxu0 0.0
    %351 = vmatpush1.msra.mxu0 0.0
    %352 = vmatprep.subr.mxu0 0.0
    %353 = vmatpush1.msra.mxu0 0.0
    %354 = vmatprep.subr.mxu0 0.0
    %355 = vmatpush1.msra.mxu0 0.0
    %356 = vmatprep.subr.mxu0 0.0
    %357 = vmatpush1.msra.mxu0 0.0
    %358 = vmatprep.subr.mxu0 0.0
    %359 = vmatpush1.msra.mxu0 0.0
    %360 = vmatprep.subr.mxu0 0.0
    %361 = vmatpush1.msra.mxu0 0.0
    %362 = vmatprep.subr.mxu0 0.0
    %363 = vmatpush1.msra.mxu0 0.0
    %364 = vmatprep.subr.mxu0 0.0
    %365 = vmatpush1.msra.mxu0 0.0
    %366 = vmatprep.subr.mxu0 0.0
    %367 = vmatpush1.msra.mxu0 0.0
    %368 = vmatprep.subr.mxu0 0.0
    %369 = vmatpush1.msra.mxu0 0.0
    %370 = vmatprep.subr.mxu0 0.0
    %371 = vmatpush1.msra.mxu0 0.0
    %372 = vmatprep.subr.mxu0 0.0
    %373 = vmatpush1.msra.mxu0 0.0
    %374 = vmatprep.subr.mxu0 0.0
    %375 = vmatpush1.msra.mxu0 0.0
    %376 = vmatprep.subr.mxu0 0.0
    %377 = vmatpush1.msra.mxu0 0.0
    %378 = vmatprep.subr.mxu0 0.0
    %379 = vmatpush1.msra.mxu0 0.0
    %380 = vmatprep.mubr.f32.mxu0 0.0
    %381 = vmatmul.mubr.f32.gmra.mrb[0].mxu0 %v243
    %v382 = vpop.f32.mrb[0].mxu0
    %v383 = vadd.f32 %v239, %v382
    %v384 = vpop.f32.mrb[0].mxu0
    %v385 = vadd.f32 %v239, %v384
    %386 = vdwg.mxu0
    %v387 = vmax.f32 %v312, 0.0
    %v388 = vmax.f32 %v314, 0.0
    %v389 = vmax.f32 %v383, 0.0
    %v390 = vmax.f32 %v385, 0.0
    %391 = vrot.lane.b32.xlu0 %v387, 17
    %v392 = vpop.permute.xlu0 %391
    %393 = vrot.lane.b32.xlu0 %v388, 17
    %v394 = vpop.permute.xlu0 %393
    %395 = vrot.lane.b32.xlu0 %v389, 17
    %v396 = vpop.permute.xlu0 %395
    %397 = vrot.lane.b32.xlu0 %v390, 17
    %v398 = vpop.permute.xlu0 %397
    %v399 = vsel %vm67, %v396, %v398
    %v400 = vsel %vm67, %v394, %v396
    %v401 = vsel %vm67, %v392, %v394
    %v402 = vsel %vm67, %v398, %v392
    %v403 = vmul.f32 %v402, %v72
    %v404 = vmul.f32 %v401, %v73
    %v405 = vmul.f32 %v400, %v74
    %v406 = vmul.f32 %v399, %v75
    %407 = vrot.lane.b32.xlu0 %v387, 16
    %v408 = vpop.permute.xlu0 %407
    %409 = vrot.lane.b32.xlu0 %v388, 16
    %v410 = vpop.permute.xlu0 %409
    %411 = vrot.lane.b32.xlu0 %v389, 16
    %v412 = vpop.permute.xlu0 %411
    %413 = vrot.lane.b32.xlu0 %v390, 16
    %v414 = vpop.permute.xlu0 %413
    %v415 = vsel %vm88, %v412, %v414
    %v416 = vsel %vm88, %v410, %v412
    %v417 = vsel %vm88, %v408, %v410
    %v418 = vsel %vm88, %v414, %v408
    %v419 = vmul.f32 %v418, %v94
    %v420 = vmul.f32 %v417, %v95
    %v421 = vmul.f32 %v416, %v96
    %v422 = vmul.f32 %v415, %v97
    %423 = vrot.lane.b32.xlu0 %v387, 15
    %v424 = vpop.permute.xlu0 %423
    %425 = vrot.lane.b32.xlu0 %v388, 15
    %v426 = vpop.permute.xlu0 %425
    %427 = vrot.lane.b32.xlu0 %v389, 15
    %v428 = vpop.permute.xlu0 %427
    %429 = vrot.lane.b32.xlu0 %v390, 15
    %v430 = vpop.permute.xlu0 %429
    %v431 = vsel %vm110, %v428, %v430
    %v432 = vsel %vm110, %v426, %v428
    %v433 = vsel %vm110, %v424, %v426
    %v434 = vsel %vm110, %v430, %v424
    %v435 = vmul.f32 %v434, %v116
    %v436 = vmul.f32 %v433, %v117
    %v437 = vmul.f32 %v432, %v118
    %v438 = vmul.f32 %v431, %v119
    %439 = vrot.lane.b32.xlu0 %v387, 1
    %v440 = vpop.permute.xlu0 %439
    %441 = vrot.lane.b32.xlu0 %v388, 1
    %v442 = vpop.permute.xlu0 %441
    %443 = vrot.lane.b32.xlu0 %v389, 1
    %v444 = vpop.permute.xlu0 %443
    %445 = vrot.lane.b32.xlu0 %v390, 1
    %v446 = vpop.permute.xlu0 %445
    %v447 = vsel %vm132, %v444, %v446
    %v448 = vsel %vm132, %v442, %v444
    %v449 = vsel %vm132, %v440, %v442
    %v450 = vsel %vm132, %v446, %v440
    %v451 = vmul.f32 %v450, %v138
    %v452 = vmul.f32 %v449, %v139
    %v453 = vmul.f32 %v448, %v140
    %v454 = vmul.f32 %v447, %v141
    %455 = vrot.lane.b32.xlu0 %v387, 127
    %v456 = vpop.permute.xlu0 %455
    %457 = vrot.lane.b32.xlu0 %v388, 127
    %v458 = vpop.permute.xlu0 %457
    %459 = vrot.lane.b32.xlu0 %v389, 127
    %v460 = vpop.permute.xlu0 %459
    %461 = vrot.lane.b32.xlu0 %v390, 127
    %v462 = vpop.permute.xlu0 %461
    %v463 = vsel %vm154, %v460, %v462
    %v464 = vsel %vm154, %v458, %v460
    %v465 = vsel %vm154, %v456, %v458
    %v466 = vsel %vm154, %v462, %v456
    %v467 = vmul.f32 %v465, %v160
    %v468 = vmul.f32 %v464, %v161
    %v469 = vmul.f32 %v463, %v162
    %v470 = vmul.f32 %v466, %v163
    %471 = vrot.lane.b32.xlu0 %v387, 113
    %v472 = vpop.permute.xlu0 %471
    %473 = vrot.lane.b32.xlu0 %v388, 113
    %v474 = vpop.permute.xlu0 %473
    %475 = vrot.lane.b32.xlu0 %v389, 113
    %v476 = vpop.permute.xlu0 %475
    %477 = vrot.lane.b32.xlu0 %v390, 113
    %v478 = vpop.permute.xlu0 %477
    %v479 = vsel %vm176, %v476, %v478
    %v480 = vsel %vm176, %v474, %v476
    %v481 = vsel %vm176, %v472, %v474
    %v482 = vsel %vm176, %v478, %v472
    %v483 = vmul.f32 %v481, %v182
    %v484 = vmul.f32 %v480, %v183
    %v485 = vmul.f32 %v479, %v184
    %v486 = vmul.f32 %v482, %v185
    %487 = vrot.lane.b32.xlu0 %v387, 112
    %v488 = vpop.permute.xlu0 %487
    %489 = vrot.lane.b32.xlu0 %v388, 112
    %v490 = vpop.permute.xlu0 %489
    %491 = vrot.lane.b32.xlu0 %v389, 112
    %v492 = vpop.permute.xlu0 %491
    %493 = vrot.lane.b32.xlu0 %v390, 112
    %v494 = vpop.permute.xlu0 %493
    %v495 = vsel %vm198, %v492, %v494
    %v496 = vsel %vm198, %v490, %v492
    %v497 = vsel %vm198, %v488, %v490
    %v498 = vsel %vm198, %v494, %v488
    %v499 = vmul.f32 %v497, %v204
    %v500 = vmul.f32 %v496, %v205
    %v501 = vmul.f32 %v495, %v206
    %v502 = vmul.f32 %v498, %v207
    %503 = vrot.lane.b32.xlu0 %v387, 111
    %v504 = vpop.permute.xlu0 %503
    %505 = vrot.lane.b32.xlu0 %v388, 111
    %v506 = vpop.permute.xlu0 %505
    %507 = vrot.lane.b32.xlu0 %v389, 111
    %v508 = vpop.permute.xlu0 %507
    %509 = vrot.lane.b32.xlu0 %v390, 111
    %v510 = vpop.permute.xlu0 %509
    %v511 = vsel %vm220, %v508, %v510
    %v512 = vsel %vm220, %v506, %v508
    %v513 = vsel %vm220, %v504, %v506
    %v514 = vsel %vm220, %v510, %v504
    %v515 = vmul.f32 %v513, %v226
    %v516 = vmul.f32 %v512, %v227
    %v517 = vmul.f32 %v511, %v228
    %v518 = vmul.f32 %v514, %v229
    %v519 = vld [vmem:[%s4] sm:$0xff]
    %v520 = vld [vmem:[%s5] sm:$0xff]
    %522 = vset.pattern.permute.xlu0 0
    %523 = vperm.xlu0 %522, %v520
    %v524 = vpop.permute.xlu0 %523
    %v527 = vsel %vm241, %v519, 0
    %529 = vmatprep.subr.mxu0 %v404
    %530 = vmatpush1.msra.mxu0 %v403
    %531 = vmatprep.subr.mxu0 %v420
    %532 = vmatpush1.msra.mxu0 %v419
    %533 = vmatprep.subr.mxu0 %v436
    %534 = vmatpush1.msra.mxu0 %v435
    %535 = vmatprep.subr.mxu0 %v452
    %536 = vmatpush1.msra.mxu0 %v451
    %537 = vmatprep.subr.mxu0 %v388
    %538 = vmatpush1.msra.mxu0 %v387
    %539 = vmatprep.subr.mxu0 %v468
    %540 = vmatpush1.msra.mxu0 %v467
    %541 = vmatprep.subr.mxu0 %v484
    %542 = vmatpush1.msra.mxu0 %v483
    %543 = vmatprep.subr.mxu0 %v500
    %544 = vmatpush1.msra.mxu0 %v499
    %545 = vmatprep.subr.mxu0 %v516
    %546 = vmatpush1.msra.mxu0 %v515
    %547 = vmatprep.subr.mxu0 0.0
    %548 = vmatpush1.msra.mxu0 0.0
    %549 = vmatprep.subr.mxu0 0.0
    %550 = vmatpush1.msra.mxu0 0.0
    %551 = vmatprep.subr.mxu0 0.0
    %552 = vmatpush1.msra.mxu0 0.0
    %553 = vmatprep.subr.mxu0 0.0
    %554 = vmatpush1.msra.mxu0 0.0
    %555 = vmatprep.subr.mxu0 0.0
    %556 = vmatpush1.msra.mxu0 0.0
    %557 = vmatprep.subr.mxu0 0.0
    %558 = vmatpush1.msra.mxu0 0.0
    %559 = vmatprep.subr.mxu0 0.0
    %560 = vmatpush1.msra.mxu0 0.0
    %561 = vmatprep.subr.mxu0 0.0
    %562 = vmatpush1.msra.mxu0 0.0
    %563 = vmatprep.subr.mxu0 0.0
    %564 = vmatpush1.msra.mxu0 0.0
    %565 = vmatprep.subr.mxu0 0.0
    %566 = vmatpush1.msra.mxu0 0.0
    %567 = vmatprep.subr.mxu0 0.0
    %568 = vmatpush1.msra.mxu0 0.0
    %569 = vmatprep.subr.mxu0 0.0
    %570 = vmatpush1.msra.mxu0 0.0
    %571 = vmatprep.subr.mxu0 0.0
    %572 = vmatpush1.msra.mxu0 0.0
    %573 = vmatprep.subr.mxu0 0.0
    %574 = vmatpush1.msra.mxu0 0.0
    %575 = vmatprep.subr.mxu0 0.0
    %576 = vmatpush1.msra.mxu0 0.0
    %577 = vmatprep.subr.mxu0 0.0
    %578 = vmatpush1.msra.mxu0 0.0
    %579 = vmatprep.subr.mxu0 0.0
    %580 = vmatpush1.msra.mxu0 0.0
    %581 = vmatprep.subr.mxu0 0.0
    %582 = vmatpush1.msra.mxu0 0.0
    %583 = vmatprep.subr.mxu0 0.0
    %584 = vmatpush1.msra.mxu0 0.0
    %585 = vmatprep.subr.mxu0 0.0
    %586 = vmatpush1.msra.mxu0 0.0
    %587 = vmatprep.subr.mxu0 0.0
    %588 = vmatpush1.msra.mxu0 0.0
    %589 = vmatprep.subr.mxu0 0.0
    %590 = vmatpush1.msra.mxu0 0.0
    %591 = vmatprep.subr.mxu0 0.0
    %592 = vmatpush1.msra.mxu0 0.0
    %593 = vmatprep.mubr.f32.mxu0 0.0
    %594 = vmatmul.mubr.f32.gmra.mrb[0].mxu0 %v527
    %v595 = vpop.f32.mrb[0].mxu0
    %v596 = vadd.f32 %v524, %v595
    %v597 = vpop.f32.mrb[0].mxu0
    %v598 = vadd.f32 %v524, %v597
    %599 = vdwg.mxu0
    %600 = vmatprep.subr.mxu0 %v406
    %601 = vmatpush1.msra.mxu0 %v405
    %602 = vmatprep.subr.mxu0 %v422
    %603 = vmatpush1.msra.mxu0 %v421
    %604 = vmatprep.subr.mxu0 %v438
    %605 = vmatpush1.msra.mxu0 %v437
    %606 = vmatprep.subr.mxu0 %v454
    %607 = vmatpush1.msra.mxu0 %v453
    %608 = vmatprep.subr.mxu0 %v390
    %609 = vmatpush1.msra.mxu0 %v389
    %610 = vmatprep.subr.mxu0 %v470
    %611 = vmatpush1.msra.mxu0 %v469
    %612 = vmatprep.subr.mxu0 %v486
    %613 = vmatpush1.msra.mxu0 %v485
    %614 = vmatprep.subr.mxu0 %v502
    %615 = vmatpush1.msra.mxu0 %v501
    %616 = vmatprep.subr.mxu0 %v518
    %617 = vmatpush1.msra.mxu0 %v517
    %618 = vmatprep.subr.mxu0 0.0
    %619 = vmatpush1.msra.mxu0 0.0
    %620 = vmatprep.subr.mxu0 0.0
    %621 = vmatpush1.msra.mxu0 0.0
    %622 = vmatprep.subr.mxu0 0.0
    %623 = vmatpush1.msra.mxu0 0.0
    %624 = vmatprep.subr.mxu0 0.0
    %625 = vmatpush1.msra.mxu0 0.0
    %626 = vmatprep.subr.mxu0 0.0
    %627 = vmatpush1.msra.mxu0 0.0
    %628 = vmatprep.subr.mxu0 0.0
    %629 = vmatpush1.msra.mxu0 0.0
    %630 = vmatprep.subr.mxu0 0.0
    %631 = vmatpush1.msra.mxu0 0.0
    %632 = vmatprep.subr.mxu0 0.0
    %633 = vmatpush1.msra.mxu0 0.0
    %634 = vmatprep.subr.mxu0 0.0
    %635 = vmatpush1.msra.mxu0 0.0
    %636 = vmatprep.subr.mxu0 0.0
    %637 = vmatpush1.msra.mxu0 0.0
    %638 = vmatprep.subr.mxu0 0.0
    %639 = vmatpush1.msra.mxu0 0.0
    %640 = vmatprep.subr.mxu0 0.0
    %641 = vmatpush1.msra.mxu0 0.0
    %642 = vmatprep.subr.mxu0 0.0
    %643 = vmatpush1.msra.mxu0 0.0
    %644 = vmatprep.subr.mxu0 0.0
    %645 = vmatpush1.msra.mxu0 0.0
    %646 = vmatprep.subr.mxu0 0.0
    %647 = vmatpush1.msra.mxu0 0.0
    %648 = vmatprep.subr.mxu0 0.0
    %649 = vmatpush1.msra.mxu0 0.0
    %650 = vmatprep.subr.mxu0 0.0
    %651 = vmatpush1.msra.mxu0 0.0
    %652 = vmatprep.subr.mxu0 0.0
    %653 = vmatpush1.msra.mxu0 0.0
    %654 = vmatprep.subr.mxu0 0.0
    %655 = vmatpush1.msra.mxu0 0.0
    %656 = vmatprep.subr.mxu0 0.0
    %657 = vmatpush1.msra.mxu0 0.0
    %658 = vmatprep.subr.mxu0 0.0
    %659 = vmatpush1.msra.mxu0 0.0
    %660 = vmatprep.subr.mxu0 0.0
    %661 = vmatpush1.msra.mxu0 0.0
    %662 = vmatprep.subr.mxu0 0.0
    %663 = vmatpush1.msra.mxu0 0.0
    %664 = vmatprep.mubr.f32.mxu0 0.0
    %665 = vmatmul.mubr.f32.gmra.mrb[0].mxu0 %v527
    %v666 = vpop.f32.mrb[0].mxu0
    %v667 = vadd.f32 %v524, %v666
    %v668 = vpop.f32.mrb[0].mxu0
    %v669 = vadd.f32 %v524, %v668
    %670 = vdwg.mxu0
    %v671 = vadd.f32 %v52, %v596
    %v672 = vadd.f32 %v53, %v598
    %v673 = vadd.f32 %v55, %v667
    %v674 = vadd.f32 %v56, %v669
    %v675 = vmax.f32 %v671, 0.0
    %v676 = vmax.f32 %v672, 0.0
    %v677 = vmax.f32 %v673, 0.0
    %v678 = vmax.f32 %v674, 0.0
    %679 = vst [vmem:[#allocation7] sm:$0xff] %v675
    %680 = vst [vmem:[#allocation7 + $0x8] sm:$0xff] %v676
    %s681 = scalar_lea.vmem [#allocation7], 16
    %682 = vst [vmem:[%s681] sm:$0xff] %v677
    %683 = vst [vmem:[%s681 + $0x8] sm:$0xff] %v678
    // Predicated region
    $region34: #{tpu_custom_call.1} parent=1 // pred_check
      _
    $region35: #{tpu_custom_call.1} parent=1 // pred_check_branch
      %685 = sbr.rel (0) target = $region37
    $region36: #{tpu_custom_call.1} parent=1 // pred_region
      %s687 = ssub.s32 512, 512
      %688 = vsyncadd [#allocation4], %s687
      %s689 = sshll.u32 [#allocation7], 4
      %s690 = int_to_ptr.vmem [resolvable:$true] %s689
      %695 = dma.vmem_to_hbm [thread:$0]  %s690, 512, %s6, [#allocation4], 256, 256, 16
    $region37: #{tpu_custom_call.1} parent=1 // pred_fallthru
      _
    // Predicated region
    $region38: #{tpu_custom_call.1} parent=1 // pred_check
      _
    $region39: #{tpu_custom_call.1} parent=1 // pred_check_branch
      %697 = sbr.rel (0) target = $region41
    $region40: #{tpu_custom_call.1} parent=1 // pred_region
      %698 = dma.done [#allocation4], 512
    $region41: #{tpu_custom_call.1} parent=1 // pred_fallthru
      _
    %699 = vsyncpa [#allocation3], 1
    %700 = vsyncpa [#allocation6], 1
    %701 = vsyncpa [#allocation4], 1

</llo_original>
